<compile_context>
chip_gen: v7x
topology: tpu7x:2x2x1
jax: 0.10.0
libtpu: 0.0.40
codegen_flags: <defaults>
</compile_context>

<pallas_src>
import functools

import jax
import jax.numpy as jnp
from jax.experimental import pallas as pl
from jax.experimental.pallas import tpu as pltpu


def _round_up(x: int, m: int) -> int:
    return ((x + m - 1) // m) * m


def _cdiv(a: int, b: int) -> int:
    return (a + b - 1) // b


def _mlp_kernel(x_ref, w1_ref, b1_ref, w2_ref, b2_ref, o_ref):
    # In-kernel bf16 downcast of the activation stream (VPU filler; saves the
    # separate wrapper-side cast pass over x in HBM).
    x = x_ref[...].astype(jnp.bfloat16)
    # hidden = relu(x @ W1 + b1)   (bf16 operands, f32 accumulation)
    h = jnp.dot(x, w1_ref[...], preferred_element_type=jnp.float32)
    h = jnp.maximum(h + b1_ref[...], 0.0)          # bias + ReLU in f32 (VPU)
    # logits = hidden @ W2 + b2  -- bf16 operands for the 2nd MXU pass.
    # (On v5e this pack is extra f32 VALU work, but the 2nd matmul is tiny so
    #  MXU has slack; keep it unless profiling shows VALU on the crit path.)
    out = jnp.dot(h.astype(jnp.bfloat16), w2_ref[...],
                  preferred_element_type=jnp.float32)
    o_ref[...] = (out + b2_ref[...]).astype(o_ref.dtype)


def _vmem_limit_bytes(vmem_est: int) -> int:
    """Generation-aware VMEM cap: ~75% of per-core VMEM, >= 32 MiB."""
    try:
        cap = int(getattr(pltpu.get_tpu_info(), "vmem_capacity_bytes", 64 << 20))
    except Exception:  # pragma: no cover - conservative fallback
        cap = 64 << 20
    budget = (cap * 3) // 4          # ~48 MiB on v7x, ~96 MiB on v5e/v6e
    return int(min(budget, max(32 << 20, vmem_est)))


@functools.partial(jax.jit, static_argnames=("num_cls", "max_tile"))
def _forward_padded(embedding, w1_p, b1_p, w2_p, b2_p, *, num_cls, max_tile=512):
    """embedding: [B, dim] f32.  w1_p/w2_p pre-padded bf16, b1_p/b2_p padded f32 rows."""
    B, dim = embedding.shape
    dim_p, hid_p = w1_p.shape
    ncls_p = w2_p.shape[1]

    # --- balanced batch tiling (multiple of 16 sublanes, capped at max_tile) ---
    n_tiles = _cdiv(B, max_tile)
    if B >= 256:
        # Give v7x's two TensorCores an even number of "parallel" grid steps.
        n_tiles = max(n_tiles, 2)
        if n_tiles % 2:
            n_tiles += 1
    tile = _round_up(max(_cdiv(B, n_tiles), 1), 16)
    B_p = n_tiles * tile

    # --- pad activations only (f32; bf16 cast happens inside the kernel) ---
    x_p = embedding
    if B_p != B or dim_p != dim:
        x_p = jnp.pad(embedding, ((0, B_p - B), (0, dim_p - dim)))

    grid = (n_tiles,)

    # Scheduler hint for XLA.
    flops = 2 * B_p * dim_p * hid_p + 2 * B_p * hid_p * ncls_p
    bytes_accessed = (x_p.size * 4 + w1_p.size * 2 + w2_p.size * 2
                      + b1_p.size * 4 + b2_p.size * 4 + B_p * ncls_p * 4)

    # VMEM: double-buffered x/out tiles + single-buffered resident weights.
    vmem_est = (2 * tile * dim_p * 4        # x tile (f32), double buffered
                + 2 * tile * ncls_p * 4     # out tile (f32), double buffered
                + dim_p * hid_p * 2         # W1 bf16, single buffered
                + hid_p * ncls_p * 2        # W2 bf16, single buffered
                + (hid_p + ncls_p) * 4      # biases
                + (2 << 20))                # headroom for Mosaic internal scratch

    # Resident, constant-index operands: single buffer (no re-fetch across steps).
    resident = pl.Buffered(1)

    out = pl.pallas_call(
        _mlp_kernel,
        out_shape=jax.ShapeDtypeStruct((B_p, ncls_p), jnp.float32),
        grid_spec=pltpu.PrefetchScalarGridSpec(
            num_scalar_prefetch=0,
            grid=grid,
            in_specs=[
                # x tile: streamed; default double-buffering.
                # TODO(synk): bump to pl.Buffered(3) if profiling shows exposed DMA.
                pl.BlockSpec((tile, dim_p), lambda i: (i, 0)),
                pl.BlockSpec((dim_p, hid_p), lambda i: (0, 0), pipeline_mode=resident),
                pl.BlockSpec((1, hid_p), lambda i: (0, 0), pipeline_mode=resident),
                pl.BlockSpec((hid_p, ncls_p), lambda i: (0, 0), pipeline_mode=resident),
                pl.BlockSpec((1, ncls_p), lambda i: (0, 0), pipeline_mode=resident),
            ],
            out_specs=pl.BlockSpec((tile, ncls_p), lambda i: (i, 0)),
        ),
        compiler_params=pltpu.CompilerParams(
            dimension_semantics=("parallel",),   # shards batch across v7x TCs
            vmem_limit_bytes=_vmem_limit_bytes(vmem_est),
        ),
        cost_estimate=pl.CostEstimate(
            flops=flops, transcendentals=0, bytes_accessed=bytes_accessed),
    )(x_p, w1_p, b1_p, w2_p, b2_p)

    # TODO(synk): if dim/hidden grow so a weight no longer fits the VMEM budget,
    # add a K-tiling "arbitrary" grid axis with an f32 accumulator scratch.
    if B_p == B and ncls_p == num_cls:
        return out
    return out[:B, :num_cls]


class DetectionModel:
    """JAX/Pallas equivalent of the PyTorch Detection_Model forward pass.

    Weight padding to lane multiples of 128 and the bf16 cast are done ONCE
    here (model-load time), not on every forward call.
    """

    def __init__(self, w1, b1, w2, b2):
        dim, hidden = w1.shape
        num_cls = w2.shape[1]
        dim_p = _round_up(dim, 128)
        hid_p = _round_up(hidden, 128)
        ncls_p = _round_up(num_cls, 128)

        self.num_cls = num_cls
        self.w1_p = jnp.pad(w1, ((0, dim_p - dim), (0, hid_p - hidden))).astype(jnp.bfloat16)
        self.w2_p = jnp.pad(w2, ((0, hid_p - hidden), (0, ncls_p - num_cls))).astype(jnp.bfloat16)
        self.b1_p = jnp.pad(b1.reshape(1, -1).astype(jnp.float32),
                            ((0, 0), (0, hid_p - hidden)))
        self.b2_p = jnp.pad(b2.reshape(1, -1).astype(jnp.float32),
                            ((0, 0), (0, ncls_p - num_cls)))

    def __call__(self, embedding):
        return _forward_padded(embedding, self.w1_p, self.b1_p, self.w2_p, self.b2_p,
                               num_cls=self.num_cls)


def init_params(key, dim, hidden, num_cls, dtype=jnp.float32):
    """Deterministic init mimicking torch.nn.Linear default (uniform +-1/sqrt(fan_in))."""
    k1, k2, k3, k4 = jax.random.split(key, 4)
    lim1 = 1.0 / jnp.sqrt(dim)
    lim2 = 1.0 / jnp.sqrt(hidden)
    w1 = jax.random.uniform(k1, (dim, hidden), dtype, -lim1, lim1)
    b1 = jax.random.uniform(k2, (hidden,), dtype, -lim1, lim1)
    w2 = jax.random.uniform(k3, (hidden, num_cls), dtype, -lim2, lim2)
    b2 = jax.random.uniform(k4, (num_cls,), dtype, -lim2, lim2)
    return w1, b1, w2, b2


if __name__ == "__main__":
    # args.classifier_input_size = 32 -> dim = 32 * 4 = 128
    # args.classifier_hidden_size = 128, num_cls = 8, batch = 8
    classifier_input_size = 32
    dim = classifier_input_size * 4
    hidden = 128
    num_cls = 8
    batch = 8

    key = jax.random.PRNGKey(0)
    k_x, k_p = jax.random.split(key)
    embedding = jax.random.normal(k_x, (batch, dim), jnp.float32)
    w1, b1, w2, b2 = init_params(k_p, dim, hidden, num_cls)

    model = DetectionModel(w1, b1, w2, b2)
    out = model(embedding)
    out = jax.block_until_ready(out)
    assert out.shape == (batch, num_cls)

    # Reference with the same bf16 operand quantization (f32 accumulation).
    xb = embedding.astype(jnp.bfloat16)
    w1b, w2b = w1.astype(jnp.bfloat16), w2.astype(jnp.bfloat16)
    h_ref = jnp.maximum(
        jnp.dot(xb, w1b, preferred_element_type=jnp.float32) + b1, 0.0)
    ref_bf16 = jnp.dot(h_ref.astype(jnp.bfloat16), w2b,
                       preferred_element_type=jnp.float32) + b2
    assert jnp.allclose(out, ref_bf16, atol=1e-3, rtol=1e-3)

    # Loose sanity check against the pure-f32 torch-equivalent forward.
    ref_f32 = jnp.maximum(embedding @ w1 + b1, 0.0) @ w2 + b2
    assert jnp.allclose(out, ref_f32, atol=5e-2, rtol=5e-2)

    print("KERNEL_OK")
</pallas_src>

<mosaic_0001>
module attributes {stable_mosaic.version = 11 : i64} {
  func.func @_mlp_kernel(%arg0: i32, %arg1: memref<16x128xf32, #tpu.memory_space<vmem>>, %arg2: memref<128x128xbf16, #tpu.memory_space<vmem>>, %arg3: memref<1x128xf32, #tpu.memory_space<vmem>>, %arg4: memref<128x128xbf16, #tpu.memory_space<vmem>>, %arg5: memref<1x128xf32, #tpu.memory_space<vmem>>, %arg6: memref<16x128xf32, #tpu.memory_space<vmem>>) attributes {dimension_semantics = [#tpu.dimension_semantics<parallel>], iteration_bounds = array<i64: 1>, scalar_prefetch = 0 : i64, scratch_operands = 0 : i64, tpu.core_type = #tpu.core_type<tc>, window_params = [{transform_indices = @transform_0, window_bounds = array<i64: 16, 128>}, {pipeline_mode = #tpu.pipeline_mode<synchronous>, transform_indices = @transform_1, window_bounds = array<i64: 128, 128>}, {pipeline_mode = #tpu.pipeline_mode<synchronous>, transform_indices = @transform_2, window_bounds = array<i64: 1, 128>}, {pipeline_mode = #tpu.pipeline_mode<synchronous>, transform_indices = @transform_3, window_bounds = array<i64: 128, 128>}, {pipeline_mode = #tpu.pipeline_mode<synchronous>, transform_indices = @transform_4, window_bounds = array<i64: 1, 128>}, {transform_indices = @transform_5, window_bounds = array<i64: 16, 128>}]} {
    %c0 = arith.constant 0 : index
    %c0_0 = arith.constant 0 : index
    %0 = vector.load %arg1[%c0, %c0_0] : memref<16x128xf32, #tpu.memory_space<vmem>>, vector<16x128xf32>
    %1 = arith.truncf %0 : vector<16x128xf32> to vector<16x128xbf16>
    %c0_1 = arith.constant 0 : index
    %c0_2 = arith.constant 0 : index
    %2 = vector.load %arg2[%c0_1, %c0_2] : memref<128x128xbf16, #tpu.memory_space<vmem>>, vector<128x128xbf16>
    %cst = arith.constant dense<0.000000e+00> : vector<16x128xf32>
    %3 = tpu.matmul %1, %2, %cst {dimension_numbers = #tpu.dot_dimension_numbers<[1], [0], [0], [1], [0, 0, 1, 1], [], []>} : vector<16x128xbf16>, vector<128x128xbf16>, vector<16x128xf32> -> vector<16x128xf32>
    %c0_3 = arith.constant 0 : index
    %c0_4 = arith.constant 0 : index
    %4 = vector.load %arg3[%c0_3, %c0_4] : memref<1x128xf32, #tpu.memory_space<vmem>>, vector<1x128xf32>
    %5 = vector.broadcast %4 : vector<1x128xf32> to vector<16x128xf32>
    %6 = arith.addf %3, %5 : vector<16x128xf32>
    %cst_5 = arith.constant 0.000000e+00 : f32
    %7 = vector.broadcast %cst_5 : f32 to vector<16x128xf32>
    %8 = arith.maximumf %6, %7 : vector<16x128xf32>
    %9 = arith.truncf %8 : vector<16x128xf32> to vector<16x128xbf16>
    %c0_6 = arith.constant 0 : index
    %c0_7 = arith.constant 0 : index
    %10 = vector.load %arg4[%c0_6, %c0_7] : memref<128x128xbf16, #tpu.memory_space<vmem>>, vector<128x128xbf16>
    %cst_8 = arith.constant dense<0.000000e+00> : vector<16x128xf32>
    %11 = tpu.matmul %9, %10, %cst_8 {dimension_numbers = #tpu.dot_dimension_numbers<[1], [0], [0], [1], [0, 0, 1, 1], [], []>} : vector<16x128xbf16>, vector<128x128xbf16>, vector<16x128xf32> -> vector<16x128xf32>
    %c0_9 = arith.constant 0 : index
    %c0_10 = arith.constant 0 : index
    %12 = vector.load %arg5[%c0_9, %c0_10] : memref<1x128xf32, #tpu.memory_space<vmem>>, vector<1x128xf32>
    %13 = vector.broadcast %12 : vector<1x128xf32> to vector<16x128xf32>
    %14 = arith.addf %11, %13 : vector<16x128xf32>
    %c0_11 = arith.constant 0 : index
    %c0_12 = arith.constant 0 : index
    %15 = vector.load %arg6[%c0_11, %c0_12] : memref<16x128xf32, #tpu.memory_space<vmem>>, vector<16x128xf32>
    tpu.vector_store %arg6[%c0_11, %c0_12], %14 {strides = array<i32>} : memref<16x128xf32, #tpu.memory_space<vmem>>, vector<16x128xf32>,
    return
  }
  func.func @transform_0(%arg0: i32) -> (i32, i32) {
    %c0_i32 = arith.constant 0 : i32
    %c0_i32_0 = arith.constant 0 : i32
    return %arg0, %c0_i32 : i32, i32
  }
  func.func @transform_1(%arg0: i32) -> (i32, i32) {
    %c0_i32 = arith.constant 0 : i32
    %c0_i32_0 = arith.constant 0 : i32
    %c0_i32_1 = arith.constant 0 : i32
    return %c0_i32, %c0_i32_0 : i32, i32
  }
  func.func @transform_2(%arg0: i32) -> (i32, i32) {
    %c0_i32 = arith.constant 0 : i32
    %c0_i32_0 = arith.constant 0 : i32
    %c0_i32_1 = arith.constant 0 : i32
    return %c0_i32, %c0_i32_0 : i32, i32
  }
  func.func @transform_3(%arg0: i32) -> (i32, i32) {
    %c0_i32 = arith.constant 0 : i32
    %c0_i32_0 = arith.constant 0 : i32
    %c0_i32_1 = arith.constant 0 : i32
    return %c0_i32, %c0_i32_0 : i32, i32
  }
  func.func @transform_4(%arg0: i32) -> (i32, i32) {
    %c0_i32 = arith.constant 0 : i32
    %c0_i32_0 = arith.constant 0 : i32
    %c0_i32_1 = arith.constant 0 : i32
    return %c0_i32, %c0_i32_0 : i32, i32
  }
  func.func @transform_5(%arg0: i32) -> (i32, i32) {
    %c0_i32 = arith.constant 0 : i32
    %c0_i32_0 = arith.constant 0 : i32
    return %arg0, %c0_i32 : i32, i32
  }
}

</mosaic_0001>

<llo_original>
// kernel: _forward_padded.1
$region0: #{_forward_padded.1}
  #allocation0 [shape = 'u32[]', space=smem, size = 0x4, offset = 0x4, fixed_abs, tag = 'smem constant byte address 0x4 - core index']
  #allocation1 [shape = 'u32[144,128]{1,0:T(1,128)}', space=vmem, size = 0x12000, scoped, tag = 'internal scratch']
  %s0 = inlined_call_operand.vmem [shape: f32[16,128], index: 0, kind: input, shape index: {}]
  %s1 = inlined_call_operand.hbm [shape: bf16[128,128], index: 1, kind: input, shape index: {}]
  %s2 = inlined_call_operand.vmem [shape: f32[1,128], index: 2, kind: input, shape index: {}]
  %s3 = inlined_call_operand.hbm [shape: bf16[128,128], index: 3, kind: input, shape index: {}]
  %s4 = inlined_call_operand.vmem [shape: f32[1,128], index: 4, kind: input, shape index: {}]
  %s5 = inlined_call_operand.vmem [shape: f32[16,128], index: 5, kind: output, shape index: {}]
  %s6 = sld [smem:[#allocation0]]
  $region38: #{_forward_padded.1} parent=0
    _
  %s8 = ssub.s32 1, %s6
  %s9 = scalar_select 0, %s8, %s6
  $region1: #{_forward_padded.1} parent=0
    #allocation2 [shape = 'u8[32768]{0}', space=vmem, size = 0x8000, scoped, tag = 'input window, operand 1, single buffered']
    #allocation3 [shape = 's32[1]{0}', space=sflag, size = 0x4, scoped, tag = 'scoped memory for _forward_padded.1']
    #allocation4 [shape = 'u8[32768]{0}', space=vmem, size = 0x8000, scoped, tag = 'input window, operand 3, single buffered']
    #allocation5 [shape = 's32[1]{0}', space=sflag, size = 0x4, scoped, tag = 'scoped memory for _forward_padded.1']
    %10 = vsyncpa [#allocation3], 0
    %11 = vsyncpa [#allocation5], 0
    // Predicated region
    $region2: #{_forward_padded.1} parent=1 // pred_check
      _
    $region3: #{_forward_padded.1} parent=1 // pred_check_branch
      %13 = sbr.rel (0) target = $region5
    $region4: #{_forward_padded.1} parent=1 // pred_region
      _
    $region5: #{_forward_padded.1} parent=1 // pred_fallthru
      _
    // Predicated region
    $region6: #{_forward_padded.1} parent=1 // pred_check
      _
    $region7: #{_forward_padded.1} parent=1 // pred_check_branch
      %15 = sbr.rel (0) target = $region9
    $region8: #{_forward_padded.1} parent=1 // pred_region
      %s17 = ssub.s32 1024, 1024
      %18 = vsyncadd [#allocation3], %s17
      %s19 = sshll.u32 [#allocation2], 4
      %s20 = int_to_ptr.vmem [resolvable:$true] %s19
      %25 = dma.hbm_to_vmem [thread:$0]  %s1, 1024, %s20, [#allocation3], 64, 64, 4
    $region9: #{_forward_padded.1} parent=1 // pred_fallthru
      _
    // Predicated region
    $region10: #{_forward_padded.1} parent=1 // pred_check
      _
    $region11: #{_forward_padded.1} parent=1 // pred_check_branch
      %27 = sbr.rel (0) target = $region13
    $region12: #{_forward_padded.1} parent=1 // pred_region
      _
    $region13: #{_forward_padded.1} parent=1 // pred_fallthru
      _
    // Predicated region
    $region14: #{_forward_padded.1} parent=1 // pred_check
      _
    $region15: #{_forward_padded.1} parent=1 // pred_check_branch
      %29 = sbr.rel (0) target = $region17
    $region16: #{_forward_padded.1} parent=1 // pred_region
      %s31 = ssub.s32 1024, 1024
      %32 = vsyncadd [#allocation5], %s31
      %s33 = sshll.u32 [#allocation4], 4
      %s34 = int_to_ptr.vmem [resolvable:$true] %s33
      %39 = dma.hbm_to_vmem [thread:$0]  %s3, 1024, %s34, [#allocation5], 64, 64, 4
    $region17: #{_forward_padded.1} parent=1 // pred_fallthru
      _
    // Predicated region
    $region18: #{_forward_padded.1} parent=1 // pred_check
      _
    $region19: #{_forward_padded.1} parent=1 // pred_check_branch
      %41 = sbr.rel (0) target = $region21
    $region20: #{_forward_padded.1} parent=1 // pred_region
      _
    $region21: #{_forward_padded.1} parent=1 // pred_fallthru
      _
    // Predicated region
    $region22: #{_forward_padded.1} parent=1 // pred_check
      _
    $region23: #{_forward_padded.1} parent=1 // pred_check_branch
      %43 = sbr.rel (0) target = $region25
    $region24: #{_forward_padded.1} parent=1 // pred_region
      %44 = dma.done [#allocation3], 1024
    $region25: #{_forward_padded.1} parent=1 // pred_fallthru
      _
    // Predicated region
    $region26: #{_forward_padded.1} parent=1 // pred_check
      _
    $region27: #{_forward_padded.1} parent=1 // pred_check_branch
      %46 = sbr.rel (0) target = $region29
    $region28: #{_forward_padded.1} parent=1 // pred_region
      %47 = dma.done [#allocation5], 1024
    $region29: #{_forward_padded.1} parent=1 // pred_fallthru
      _
    %v49 = vld [vmem:[%s0] sm:$0xff]
    %v50 = vld [vmem:[%s0 + $0x8] sm:$0xff]
    %v51 = vpack.c.bf16 %v50, %v49
    %v52 = vld [vmem:[#allocation2] sm:$0xf]
    %v53 = vld [vmem:[#allocation2 + $0x4] sm:$0xf]
    %v54 = vld [vmem:[#allocation2 + $0x8] sm:$0xf]
    %v55 = vld [vmem:[#allocation2 + $0xc] sm:$0xf]
    %v56 = vld [vmem:[#allocation2 + $0x10] sm:$0xf]
    %v57 = vld [vmem:[#allocation2 + $0x14] sm:$0xf]
    %v58 = vld [vmem:[#allocation2 + $0x18] sm:$0xf]
    %v59 = vld [vmem:[#allocation2 + $0x1c] sm:$0xf]
    %v60 = vld [vmem:[#allocation2 + $0x20] sm:$0xf]
    %v61 = vld [vmem:[#allocation2 + $0x24] sm:$0xf]
    %v62 = vld [vmem:[#allocation2 + $0x28] sm:$0xf]
    %v63 = vld [vmem:[#allocation2 + $0x2c] sm:$0xf]
    %v64 = vld [vmem:[#allocation2 + $0x30] sm:$0xf]
    %v65 = vld [vmem:[#allocation2 + $0x34] sm:$0xf]
    %v66 = vld [vmem:[#allocation2 + $0x38] sm:$0xf]
    %v67 = vld [vmem:[#allocation2 + $0x3c] sm:$0xf]
    %v68 = vld [vmem:[%s2] sm:$0x1]
    %v70 = vlaneseq
    %v71 = vshrl.u32 %v70, 7
    %v72 = vsub.s32 0, %v71
    %v73 = vrot.slane %v68, %v72
    %v91 = vunpack.c.l.b16 %v52
    %v92 = vunpack.c.l.b16 %v53
    %v93 = vunpack.c.l.b16 %v54
    %v94 = vunpack.c.l.b16 %v55
    %v95 = vunpack.c.l.b16 %v56
    %v96 = vunpack.c.l.b16 %v57
    %v97 = vunpack.c.l.b16 %v58
    %v98 = vunpack.c.l.b16 %v59
    %v99 = vunpack.c.l.b16 %v60
    %v100 = vunpack.c.l.b16 %v61
    %v101 = vunpack.c.l.b16 %v62
    %v102 = vunpack.c.l.b16 %v63
    %v103 = vunpack.c.l.b16 %v64
    %v104 = vunpack.c.l.b16 %v65
    %v105 = vunpack.c.l.b16 %v66
    %v106 = vunpack.c.l.b16 %v67
    %v107 = vpack.c.b16 %v92, %v91
    %v108 = vpack.c.b16 %v94, %v93
    %v109 = vpack.c.b16 %v96, %v95
    %v110 = vpack.c.b16 %v98, %v97
    %v111 = vpack.c.b16 %v100, %v99
    %v112 = vpack.c.b16 %v102, %v101
    %v113 = vpack.c.b16 %v104, %v103
    %v114 = vpack.c.b16 %v106, %v105
    %123 = vmatprep.subr.bf16.mxu0 0
    %124 = vmatpush1.bf16.msra.mxu0 %v107
    %125 = vmatprep.subr.bf16.mxu0 0
    %126 = vmatpush1.bf16.msra.mxu0 %v108
    %127 = vmatprep.subr.bf16.mxu0 0
    %128 = vmatpush1.bf16.msra.mxu0 %v109
    %129 = vmatprep.subr.bf16.mxu0 0
    %130 = vmatpush1.bf16.msra.mxu0 %v110
    %131 = vmatprep.subr.bf16.mxu0 0
    %132 = vmatpush1.bf16.msra.mxu0 %v111
    %133 = vmatprep.subr.bf16.mxu0 0
    %134 = vmatpush1.bf16.msra.mxu0 %v112
    %135 = vmatprep.subr.bf16.mxu0 0
    %136 = vmatpush1.bf16.msra.mxu0 %v113
    %137 = vmatprep.subr.bf16.mxu0 0
    %138 = vmatpush1.bf16.msra.mxu0 %v114
    %139 = vmatprep.subr.bf16.mxu0 0
    %140 = vmatpush1.bf16.msra.mxu0 0
    %141 = vmatprep.subr.bf16.mxu0 0
    %142 = vmatpush1.bf16.msra.mxu0 0
    %143 = vmatprep.subr.bf16.mxu0 0
    %144 = vmatpush1.bf16.msra.mxu0 0
    %145 = vmatprep.subr.bf16.mxu0 0
    %146 = vmatpush1.bf16.msra.mxu0 0
    %147 = vmatprep.subr.bf16.mxu0 0
    %148 = vmatpush1.bf16.msra.mxu0 0
    %149 = vmatprep.subr.bf16.mxu0 0
    %150 = vmatpush1.bf16.msra.mxu0 0
    %151 = vmatprep.subr.bf16.mxu0 0
    %152 = vmatpush1.bf16.msra.mxu0 0
    %153 = vmatprep.subr.bf16.mxu0 0
    %154 = vmatpush1.bf16.msra.mxu0 0
    %155 = vmatprep.mubr.bf16.mxu0 0
    %156 = vmatmul.mubr.bf16.gmra.mrb[0].mxu0 %v51
    %v157 = vpop.f32.mrb[0].mxu0
    %v158 = vadd.f32 %v73, %v157
    %v159 = vpop.f32.mrb[0].mxu0
    %v160 = vpop.f32.mrb[0].mxu0
    %v161 = vadd.f32 %v73, %v160
    %v162 = vpop.f32.mrb[0].mxu0
    %163 = vdwg.mxu0
    %v164 = vmax.f32 %v158, 0.0
    %v165 = vmax.f32 %v161, 0.0
    %v166 = vpack.c.bf16 %v165, %v164
    %v167 = vld [vmem:[#allocation4] sm:$0xf]
    %v168 = vld [vmem:[#allocation4 + $0x4] sm:$0xf]
    %v169 = vld [vmem:[#allocation4 + $0x8] sm:$0xf]
    %v170 = vld [vmem:[#allocation4 + $0xc] sm:$0xf]
    %v171 = vld [vmem:[#allocation4 + $0x10] sm:$0xf]
    %v172 = vld [vmem:[#allocation4 + $0x14] sm:$0xf]
    %v173 = vld [vmem:[#allocation4 + $0x18] sm:$0xf]
    %v174 = vld [vmem:[#allocation4 + $0x1c] sm:$0xf]
    %v175 = vld [vmem:[#allocation4 + $0x20] sm:$0xf]
    %v176 = vld [vmem:[#allocation4 + $0x24] sm:$0xf]
    %v177 = vld [vmem:[#allocation4 + $0x28] sm:$0xf]
    %v178 = vld [vmem:[#allocation4 + $0x2c] sm:$0xf]
    %v179 = vld [vmem:[#allocation4 + $0x30] sm:$0xf]
    %v180 = vld [vmem:[#allocation4 + $0x34] sm:$0xf]
    %v181 = vld [vmem:[#allocation4 + $0x38] sm:$0xf]
    %v182 = vld [vmem:[#allocation4 + $0x3c] sm:$0xf]
    %v183 = vld [vmem:[%s4] sm:$0x1]
    %v185 = vlaneseq
    %v186 = vshrl.u32 %v185, 7
    %v187 = vsub.s32 0, %v186
    %v188 = vrot.slane %v183, %v187
    %v206 = vunpack.c.l.b16 %v167
    %v207 = vunpack.c.l.b16 %v168
    %v208 = vunpack.c.l.b16 %v169
    %v209 = vunpack.c.l.b16 %v170
    %v210 = vunpack.c.l.b16 %v171
    %v211 = vunpack.c.l.b16 %v172
    %v212 = vunpack.c.l.b16 %v173
    %v213 = vunpack.c.l.b16 %v174
    %v214 = vunpack.c.l.b16 %v175
    %v215 = vunpack.c.l.b16 %v176
    %v216 = vunpack.c.l.b16 %v177
    %v217 = vunpack.c.l.b16 %v178
    %v218 = vunpack.c.l.b16 %v179
    %v219 = vunpack.c.l.b16 %v180
    %v220 = vunpack.c.l.b16 %v181
    %v221 = vunpack.c.l.b16 %v182
    %v222 = vpack.c.b16 %v207, %v206
    %v223 = vpack.c.b16 %v209, %v208
    %v224 = vpack.c.b16 %v211, %v210
    %v225 = vpack.c.b16 %v213, %v212
    %v226 = vpack.c.b16 %v215, %v214
    %v227 = vpack.c.b16 %v217, %v216
    %v228 = vpack.c.b16 %v219, %v218
    %v229 = vpack.c.b16 %v221, %v220
    %238 = vmatprep.subr.bf16.mxu0 0
    %239 = vmatpush1.bf16.msra.mxu0 %v222
    %240 = vmatprep.subr.bf16.mxu0 0
    %241 = vmatpush1.bf16.msra.mxu0 %v223
    %242 = vmatprep.subr.bf16.mxu0 0
    %243 = vmatpush1.bf16.msra.mxu0 %v224
    %244 = vmatprep.subr.bf16.mxu0 0
    %245 = vmatpush1.bf16.msra.mxu0 %v225
    %246 = vmatprep.subr.bf16.mxu0 0
    %247 = vmatpush1.bf16.msra.mxu0 %v226
    %248 = vmatprep.subr.bf16.mxu0 0
    %249 = vmatpush1.bf16.msra.mxu0 %v227
    %250 = vmatprep.subr.bf16.mxu0 0
    %251 = vmatpush1.bf16.msra.mxu0 %v228
    %252 = vmatprep.subr.bf16.mxu0 0
    %253 = vmatpush1.bf16.msra.mxu0 %v229
    %254 = vmatprep.subr.bf16.mxu0 0
    %255 = vmatpush1.bf16.msra.mxu0 0
    %256 = vmatprep.subr.bf16.mxu0 0
    %257 = vmatpush1.bf16.msra.mxu0 0
    %258 = vmatprep.subr.bf16.mxu0 0
    %259 = vmatpush1.bf16.msra.mxu0 0
    %260 = vmatprep.subr.bf16.mxu0 0
    %261 = vmatpush1.bf16.msra.mxu0 0
    %262 = vmatprep.subr.bf16.mxu0 0
    %263 = vmatpush1.bf16.msra.mxu0 0
    %264 = vmatprep.subr.bf16.mxu0 0
    %265 = vmatpush1.bf16.msra.mxu0 0
    %266 = vmatprep.subr.bf16.mxu0 0
    %267 = vmatpush1.bf16.msra.mxu0 0
    %268 = vmatprep.subr.bf16.mxu0 0
    %269 = vmatpush1.bf16.msra.mxu0 0
    %270 = vmatprep.mubr.bf16.mxu0 0
    %271 = vmatmul.mubr.bf16.gmra.mrb[0].mxu0 %v166
    %v272 = vpop.f32.mrb[0].mxu0
    %v273 = vadd.f32 %v188, %v272
    %v274 = vpop.f32.mrb[0].mxu0
    %v275 = vpop.f32.mrb[0].mxu0
    %v276 = vadd.f32 %v188, %v275
    %v277 = vpop.f32.mrb[0].mxu0
    %278 = vdwg.mxu0
    %279 = vst [vmem:[%s5] sm:$0xff] %v273
    %280 = vst [vmem:[%s5 + $0x8] sm:$0xff] %v276
    // Predicated region
    $region30: #{_forward_padded.1} parent=1 // pred_check
      _
    $region31: #{_forward_padded.1} parent=1 // pred_check_branch
      %282 = sbr.rel (0) target = $region33
    $region32: #{_forward_padded.1} parent=1 // pred_region
      _
    $region33: #{_forward_padded.1} parent=1 // pred_fallthru
      _
    // Predicated region
    $region34: #{_forward_padded.1} parent=1 // pred_check
      _
    $region35: #{_forward_padded.1} parent=1 // pred_check_branch
      %284 = sbr.rel (0) target = $region37
    $region36: #{_forward_padded.1} parent=1 // pred_region
      _
    $region37: #{_forward_padded.1} parent=1 // pred_fallthru
      _
    %285 = vsyncpa [#allocation3], 1
    %286 = vsyncpa [#allocation5], 1

</llo_original>
